<compile_context>
chip_gen: v7x
topology: tpu7x:2x2x1
jax: 0.10.0
libtpu: 0.0.40
codegen_flags: <defaults>
</compile_context>

<pallas_src>
import functools
import numpy as np
import jax
import jax.numpy as jnp
from jax.experimental import pallas as pl
from jax.experimental.pallas import tpu as pltpu


def _round_up(x, m):
    return ((x + m - 1) // m) * m


def _lane_dense_2d(x):
    """Canonicalize to a 2D layout with the long axis on the 128-lane dim."""
    if x.ndim == 1:
        return x.reshape(1, -1)
    if x.ndim == 2:
        return x
    return x.reshape(-1, x.shape[-1])


def _loss_sums_kernel(mel_out_ref, mel_post_ref, mel_tgt_ref,
                      gate_out_ref, gate_tgt_ref, mu_ref, logvar_ref,
                      out_ref, *, n_rows, tile_rows, tiles_per_par):
    """Accumulates [SSE(mel)+SSE(postnet), sum BCE-with-logits, KL sum] into
    lanes 0/1/2 of this parallel slice's (1, 8, 128) output block."""
    i = pl.program_id(0)   # parallel axis (megacore split on multi-TC chips)
    k = pl.program_id(1)   # reduction axis over mel row tiles

    @pl.when(k == 0)
    def _init():
        out_ref[...] = jnp.zeros_like(out_ref)

    lane = jax.lax.broadcasted_iota(jnp.int32, out_ref.shape, 2)

    # ---- mel sum of squared errors for this row tile ----------------------
    tile_id = i * tiles_per_par + k
    start_row = tile_id * tile_rows
    tgt = mel_tgt_ref[...].astype(jnp.float32)
    d1 = mel_out_ref[...].astype(jnp.float32) - tgt
    d2 = mel_post_ref[...].astype(jnp.float32) - tgt
    sq = d1 * d1 + d2 * d2
    # Mask rows past the real extent (partial last tile / clamped duplicate
    # tiles when total tiles don't divide evenly across the grid).
    row = start_row + jax.lax.broadcasted_iota(jnp.int32, sq.shape, 0)
    sse = jnp.sum(jnp.where(row < n_rows, sq, 0.0))
    out_ref[...] += jnp.where(lane == 0, sse, 0.0)

    # ---- gate BCE-with-logits sum and KL sum: computed exactly once -------
    @pl.when(jnp.logical_and(i == 0, k == 0))
    def _small_terms():
        x = gate_out_ref[...].astype(jnp.float32)
        z = gate_tgt_ref[...].astype(jnp.float32)
        # Stable BCEWithLogits: max(x,0) - x*z + log1p(exp(-|x|))
        bce = jnp.sum(jnp.maximum(x, 0.0) - x * z +
                      jnp.log1p(jnp.exp(-jnp.abs(x))))
        mu = mu_ref[...].astype(jnp.float32)
        lv = logvar_ref[...].astype(jnp.float32)
        kl = -0.5 * jnp.sum(1.0 + lv - mu * mu - jnp.exp(lv))
        out_ref[...] += (jnp.where(lane == 1, bce, 0.0) +
                         jnp.where(lane == 2, kl, 0.0))


def _loss_sums(mel_out, mel_out_postnet, mel_target, gate_out, gate_target,
               mu, logvar, *, num_parallel=2,
               vmem_budget_bytes=12 * 1024 * 1024):
    """Returns (sum_sq_err(mel)+sum_sq_err(postnet), sum BCE logits, KL sum)."""
    # Lane-dense 2D views (reshapes of contiguous arrays are free).
    T = int(mel_target.shape[-1])
    R = int(np.prod(mel_target.shape[:-1]))
    mel_out2 = mel_out.reshape(R, T)
    mel_post2 = mel_out_postnet.reshape(R, T)
    mel_tgt2 = mel_target.reshape(R, T)
    gate_out2 = _lane_dense_2d(gate_out)
    gate_tgt2 = gate_target.reshape(gate_out2.shape)

    # Row tile sized so double-buffered (out, postnet, target) tiles stay
    # within a conservative VMEM budget on every TPU generation.
    t_pad = _round_up(T, 128)
    budget_rows = max(8, vmem_budget_bytes // (2 * 3 * t_pad * 4))
    if R <= budget_rows:
        tile_rows = R                       # single block == full row extent
    else:
        tile_rows = max(8, (budget_rows // 8) * 8)

    total_tiles = pl.cdiv(R, tile_rows)
    npar = max(1, min(int(num_parallel), total_tiles))
    tiles_per_par = pl.cdiv(total_tiles, npar)

    def mel_index_map(i, k):
        t = i * tiles_per_par + k
        # Clamp so no block is fetched fully out of bounds; duplicate tiles
        # are zeroed by the in-kernel row mask.
        return (jnp.minimum(t, total_tiles - 1), 0)

    mel_spec = pl.BlockSpec((tile_rows, T), mel_index_map)
    resident = pl.BlockSpec(memory_space=pltpu.MemorySpace.VMEM)

    kernel = functools.partial(_loss_sums_kernel, n_rows=R,
                               tile_rows=tile_rows,
                               tiles_per_par=tiles_per_par)

    inputs = (mel_out2, mel_post2, mel_tgt2, gate_out2, gate_tgt2, mu, logvar)
    bytes_accessed = int(sum(int(x.size) * x.dtype.itemsize for x in inputs)
                         + npar * 8 * 128 * 4)
    flops = int(8 * R * T + 6 * int(gate_out2.size) + 6 * int(mu.size))
    transcendentals = int(2 * int(gate_out2.size) + int(mu.size))

    parts = pl.pallas_call(
        kernel,
        out_shape=jax.ShapeDtypeStruct((npar, 8, 128), jnp.float32),
        grid=(npar, tiles_per_par),
        in_specs=[mel_spec, mel_spec, mel_spec,
                  resident, resident, resident, resident],
        out_specs=pl.BlockSpec((1, 8, 128), lambda i, k: (i, 0, 0)),
        compiler_params=pltpu.CompilerParams(
            dimension_semantics=("parallel", "arbitrary"),
            vmem_limit_bytes=64 * 1024 * 1024),
        cost_estimate=pl.CostEstimate(flops=flops,
                                      transcendentals=transcendentals,
                                      bytes_accessed=bytes_accessed),
    )(*inputs)

    sse = jnp.sum(parts[:, 0, 0])
    bce = jnp.sum(parts[:, 0, 1])
    kl = jnp.sum(parts[:, 0, 2])
    return sse, bce, kl


def kl_anneal_function(anneal_function, step, k, x0):
    if anneal_function == 'logistic':
        return float(1.0 / (1.0 + np.exp(-k * (step - x0))))
    elif anneal_function == 'linear':
        return min(1.0, step / x0)
    elif anneal_function == 'constant':
        return 0.001
    raise ValueError(f"unknown anneal_function: {anneal_function!r}")


def tacotron2_loss_vae(model_output, targets, step,
                       anneal_function='logistic', k=0.0025, x0=1000):
    mel_target, gate_target = targets[0], targets[1]
    mel_out, mel_out_postnet, gate_out, _, mu, logvar, _, _ = model_output

    # NOTE: the PyTorch .view(-1, 1) on the gates is layout-only; the element
    # mean is identical, so we keep the lane-dense (B, T) layout on TPU.
    sums = _loss_sums(mel_out, mel_out_postnet, mel_target,
                      gate_out, gate_target, mu, logvar)
    sse, bce_sum, kl_sum = sums

    n_mel = float(np.prod(mel_target.shape))
    n_gate = float(np.prod(gate_target.shape))

    mel_loss = sse / n_mel            # MSE(mel) + MSE(postnet), shared denom
    gate_loss = bce_sum / n_gate      # mean BCE-with-logits
    kl_loss = kl_sum                  # summed KL

    kl_weight = kl_anneal_function(anneal_function, step, k, x0)
    recon_loss = mel_loss + gate_loss
    total_loss = recon_loss + kl_weight * kl_loss
    return total_loss, recon_loss, kl_loss, kl_weight


if __name__ == "__main__":
    key = jax.random.PRNGKey(0)
    B, n_mel_channels, T, latent = 2, 10, 24, 16   # small toy shapes

    keys = jax.random.split(key, 7)
    mel_target = jax.random.normal(keys[0], (B, n_mel_channels, T), jnp.float32)
    mel_out = jax.random.normal(keys[1], (B, n_mel_channels, T), jnp.float32)
    mel_out_postnet = jax.random.normal(keys[2], (B, n_mel_channels, T), jnp.float32)
    gate_target = (jax.random.uniform(keys[3], (B, T)) > 0.5).astype(jnp.float32)
    gate_out = jax.random.normal(keys[4], (B, T), jnp.float32)
    mu = 0.1 * jax.random.normal(keys[5], (B, latent), jnp.float32)
    logvar = 0.1 * jax.random.normal(keys[6], (B, latent), jnp.float32)

    model_output = (mel_out, mel_out_postnet, gate_out, None, mu, logvar, None, None)
    targets = (mel_target, gate_target)
    step = 500

    total, recon, kl, kl_w = tacotron2_loss_vae(model_output, targets, step,
                                                anneal_function='logistic',
                                                k=0.0025, x0=1000)
    jax.block_until_ready((total, recon, kl))

    # Pure-JAX reference.
    def ref():
        mt = mel_target
        mel_l = jnp.mean((mel_out - mt) ** 2) + jnp.mean((mel_out_postnet - mt) ** 2)
        x = gate_out.reshape(-1)
        z = gate_target.reshape(-1)
        gate_l = jnp.mean(jnp.maximum(x, 0) - x * z + jnp.log1p(jnp.exp(-jnp.abs(x))))
        kl_l = -0.5 * jnp.sum(1 + logvar - mu ** 2 - jnp.exp(logvar))
        kw = float(1.0 / (1.0 + np.exp(-0.0025 * (step - 1000))))
        rec = mel_l + gate_l
        return rec + kw * kl_l, rec, kl_l

    r_total, r_recon, r_kl = ref()
    assert np.allclose(float(total), float(r_total), rtol=1e-5, atol=1e-5)
    assert np.allclose(float(recon), float(r_recon), rtol=1e-5, atol=1e-5)
    assert np.allclose(float(kl), float(r_kl), rtol=1e-5, atol=1e-5)

    # Also exercise the tiled + 2-way-parallel accumulation path (tiny forced
    # VMEM budget -> multiple row tiles, edge masking, duplicate-tile skip).
    sse2, bce2, kl2 = _loss_sums(mel_out, mel_out_postnet, mel_target,
                                 gate_out, gate_target, mu, logvar,
                                 num_parallel=2, vmem_budget_bytes=24 * 1024)
    jax.block_until_ready((sse2, bce2, kl2))
    n_mel_e = float(np.prod(mel_target.shape))
    n_gate_e = float(np.prod(gate_target.shape))
    assert np.allclose(float(sse2 / n_mel_e + bce2 / n_gate_e), float(r_recon),
                       rtol=1e-5, atol=1e-5)
    assert np.allclose(float(kl2), float(r_kl), rtol=1e-5, atol=1e-5)

    print("KERNEL_OK")
</pallas_src>

<mosaic_0001>
module attributes {stable_mosaic.version = 11 : i64} {
  func.func @_loss_sums_kernel(%arg0: i32, %arg1: i32, %arg2: memref<20x24xf32, #tpu.memory_space<vmem>>, %arg3: memref<20x24xf32, #tpu.memory_space<vmem>>, %arg4: memref<20x24xf32, #tpu.memory_space<vmem>>, %arg5: memref<2x24xf32, #tpu.memory_space<vmem>>, %arg6: memref<2x24xf32, #tpu.memory_space<vmem>>, %arg7: memref<2x16xf32, #tpu.memory_space<vmem>>, %arg8: memref<2x16xf32, #tpu.memory_space<vmem>>, %arg9: memref<1x8x128xf32, #tpu.memory_space<vmem>>) attributes {dimension_semantics = [#tpu.dimension_semantics<parallel>, #tpu.dimension_semantics<arbitrary>], iteration_bounds = array<i64: 1, 1>, scalar_prefetch = 0 : i64, scratch_operands = 0 : i64, tpu.core_type = #tpu.core_type<tc>, window_params = [{transform_indices = @transform_0, window_bounds = array<i64: 20, 24>}, {transform_indices = @transform_1, window_bounds = array<i64: 20, 24>}, {transform_indices = @transform_2, window_bounds = array<i64: 20, 24>}, {pipeline_mode = #tpu.pipeline_mode<synchronous>, transform_indices = @transform_3, window_bounds = array<i64: 2, 24>}, {pipeline_mode = #tpu.pipeline_mode<synchronous>, transform_indices = @transform_4, window_bounds = array<i64: 2, 24>}, {pipeline_mode = #tpu.pipeline_mode<synchronous>, transform_indices = @transform_5, window_bounds = array<i64: 2, 16>}, {pipeline_mode = #tpu.pipeline_mode<synchronous>, transform_indices = @transform_6, window_bounds = array<i64: 2, 16>}, {transform_indices = @transform_7, window_bounds = array<i64: 1, 8, 128>}]} {
    %c0_i32 = arith.constant 0 : i32
    %0 = arith.cmpi eq, %arg1, %c0_i32 : i32
    %1 = arith.extui %0 : i1 to i32
    %c0_i32_0 = arith.constant 0 : i32
    %2 = arith.cmpi ne, %1, %c0_i32_0 : i32
    scf.if %2 {
      %cst_19 = arith.constant 0.000000e+00 : f32
      %39 = vector.broadcast %cst_19 : f32 to vector<1x8x128xf32>
      %c0_20 = arith.constant 0 : index
      %c0_21 = arith.constant 0 : index
      %c0_22 = arith.constant 0 : index
      %40 = vector.load %arg9[%c0_20, %c0_21, %c0_22] : memref<1x8x128xf32, #tpu.memory_space<vmem>>, vector<1x8x128xf32>
      tpu.vector_store %arg9[%c0_20, %c0_21, %c0_22], %39 {strides = array<i32>} : memref<1x8x128xf32, #tpu.memory_space<vmem>>, vector<1x8x128xf32>,
    } else {
    }
    %3 = tpu.iota {dimensions = array<i32: 2>} : vector<1x8x128xi32>
    %c1_i32 = arith.constant 1 : i32
    %4 = arith.muli %arg0, %c1_i32 : i32
    %5 = arith.addi %4, %arg1 : i32
    %c20_i32 = arith.constant 20 : i32
    %6 = arith.muli %5, %c20_i32 : i32
    %c0 = arith.constant 0 : index
    %c0_1 = arith.constant 0 : index
    %7 = vector.load %arg4[%c0, %c0_1] : memref<20x24xf32, #tpu.memory_space<vmem>>, vector<20x24xf32>
    %c0_2 = arith.constant 0 : index
    %c0_3 = arith.constant 0 : index
    %8 = vector.load %arg2[%c0_2, %c0_3] : memref<20x24xf32, #tpu.memory_space<vmem>>, vector<20x24xf32>
    %9 = arith.subf %8, %7 : vector<20x24xf32>
    %c0_4 = arith.constant 0 : index
    %c0_5 = arith.constant 0 : index
    %10 = vector.load %arg3[%c0_4, %c0_5] : memref<20x24xf32, #tpu.memory_space<vmem>>, vector<20x24xf32>
    %11 = arith.subf %10, %7 : vector<20x24xf32>
    %12 = arith.mulf %9, %9 : vector<20x24xf32>
    %13 = arith.mulf %11, %11 : vector<20x24xf32>
    %14 = arith.addf %12, %13 : vector<20x24xf32>
    %15 = tpu.iota {dimensions = array<i32: 0>} : vector<20x24xi32>
    %16 = vector.broadcast %6 : i32 to vector<20x24xi32>
    %17 = arith.addi %16, %15 : vector<20x24xi32>
    %c20_i32_6 = arith.constant 20 : i32
    %18 = vector.broadcast %c20_i32_6 : i32 to vector<20x24xi32>
    %19 = arith.cmpi slt, %17, %18 : vector<20x24xi32>
    %cst = arith.constant 0.000000e+00 : f32
    %20 = vector.broadcast %cst : f32 to vector<20x24xf32>
    %21 = arith.select %19, %14, %20 : vector<20x24xi1>, vector<20x24xf32>
    %22 = vector.shape_cast %21 : vector<20x24xf32> to vector<1x20x24xf32>
    %cst_7 = arith.constant dense<0.000000e+00> : vector<1xf32>
    %23 = vector.multi_reduction <add>, %22, %cst_7 [1, 2] : vector<1x20x24xf32> to vector<1xf32>
    %24 = vector.shape_cast %23 : vector<1xf32> to vector<1x1x1xf32>
    %25 = vector.extract %24[0, 0, 0] : f32 from vector<1x1x1xf32>
    %c0_8 = arith.constant 0 : index
    %c0_9 = arith.constant 0 : index
    %c0_10 = arith.constant 0 : index
    %26 = vector.load %arg9[%c0_8, %c0_9, %c0_10] : memref<1x8x128xf32, #tpu.memory_space<vmem>>, vector<1x8x128xf32>
    %c0_i32_11 = arith.constant 0 : i32
    %27 = vector.broadcast %c0_i32_11 : i32 to vector<1x8x128xi32>
    %28 = arith.cmpi eq, %3, %27 : vector<1x8x128xi32>
    %cst_12 = arith.constant 0.000000e+00 : f32
    %29 = vector.broadcast %25 : f32 to vector<1x8x128xf32>
    %30 = vector.broadcast %cst_12 : f32 to vector<1x8x128xf32>
    %31 = arith.select %28, %29, %30 : vector<1x8x128xi1>, vector<1x8x128xf32>
    %32 = arith.addf %26, %31 : vector<1x8x128xf32>
    %c0_13 = arith.constant 0 : index
    %c0_14 = arith.constant 0 : index
    %c0_15 = arith.constant 0 : index
    %33 = vector.load %arg9[%c0_13, %c0_14, %c0_15] : memref<1x8x128xf32, #tpu.memory_space<vmem>>, vector<1x8x128xf32>
    tpu.vector_store %arg9[%c0_13, %c0_14, %c0_15], %32 {strides = array<i32>} : memref<1x8x128xf32, #tpu.memory_space<vmem>>, vector<1x8x128xf32>,
    %c0_i32_16 = arith.constant 0 : i32
    %34 = arith.cmpi eq, %arg0, %c0_i32_16 : i32
    %c0_i32_17 = arith.constant 0 : i32
    %35 = arith.cmpi eq, %arg1, %c0_i32_17 : i32
    %36 = arith.andi %34, %35 : i1
    %37 = arith.extui %36 : i1 to i32
    %c0_i32_18 = arith.constant 0 : i32
    %38 = arith.cmpi ne, %37, %c0_i32_18 : i32
    scf.if %38 {
      %c0_19 = arith.constant 0 : index
      %c0_20 = arith.constant 0 : index
      %39 = vector.load %arg5[%c0_19, %c0_20] : memref<2x24xf32, #tpu.memory_space<vmem>>, vector<2x24xf32>
      %c0_21 = arith.constant 0 : index
      %c0_22 = arith.constant 0 : index
      %40 = vector.load %arg6[%c0_21, %c0_22] : memref<2x24xf32, #tpu.memory_space<vmem>>, vector<2x24xf32>
      %cst_23 = arith.constant 0.000000e+00 : f32
      %41 = vector.broadcast %cst_23 : f32 to vector<2x24xf32>
      %42 = arith.maximumf %39, %41 : vector<2x24xf32>
      %43 = arith.mulf %39, %40 : vector<2x24xf32>
      %44 = arith.subf %42, %43 : vector<2x24xf32>
      %45 = math.absf %39 : vector<2x24xf32>
      %cst_24 = arith.constant 0.000000e+00 : f32
      %46 = vector.broadcast %cst_24 : f32 to vector<2x24xf32>
      %47 = arith.subf %46, %45 : vector<2x24xf32>
      %48 = math.exp %47 : vector<2x24xf32>
      %49 = math.log1p %48 : vector<2x24xf32>
      %50 = arith.addf %44, %49 : vector<2x24xf32>
      %51 = vector.shape_cast %50 : vector<2x24xf32> to vector<1x2x24xf32>
      %cst_25 = arith.constant dense<0.000000e+00> : vector<1xf32>
      %52 = vector.multi_reduction <add>, %51, %cst_25 [1, 2] : vector<1x2x24xf32> to vector<1xf32>
      %53 = vector.shape_cast %52 : vector<1xf32> to vector<1x1x1xf32>
      %54 = vector.extract %53[0, 0, 0] : f32 from vector<1x1x1xf32>
      %c0_26 = arith.constant 0 : index
      %c0_27 = arith.constant 0 : index
      %55 = vector.load %arg7[%c0_26, %c0_27] : memref<2x16xf32, #tpu.memory_space<vmem>>, vector<2x16xf32>
      %c0_28 = arith.constant 0 : index
      %c0_29 = arith.constant 0 : index
      %56 = vector.load %arg8[%c0_28, %c0_29] : memref<2x16xf32, #tpu.memory_space<vmem>>, vector<2x16xf32>
      %cst_30 = arith.constant 1.000000e+00 : f32
      %57 = vector.broadcast %cst_30 : f32 to vector<2x16xf32>
      %58 = arith.addf %57, %56 : vector<2x16xf32>
      %59 = arith.mulf %55, %55 : vector<2x16xf32>
      %60 = arith.subf %58, %59 : vector<2x16xf32>
      %61 = math.exp %56 : vector<2x16xf32>
      %62 = arith.subf %60, %61 : vector<2x16xf32>
      %63 = vector.shape_cast %62 : vector<2x16xf32> to vector<1x2x16xf32>
      %cst_31 = arith.constant dense<0.000000e+00> : vector<1xf32>
      %64 = vector.multi_reduction <add>, %63, %cst_31 [1, 2] : vector<1x2x16xf32> to vector<1xf32>
      %65 = vector.shape_cast %64 : vector<1xf32> to vector<1x1x1xf32>
      %66 = vector.extract %65[0, 0, 0] : f32 from vector<1x1x1xf32>
      %cst_32 = arith.constant -5.000000e-01 : f32
      %67 = arith.mulf %cst_32, %66 : f32
      %c0_33 = arith.constant 0 : index
      %c0_34 = arith.constant 0 : index
      %c0_35 = arith.constant 0 : index
      %68 = vector.load %arg9[%c0_33, %c0_34, %c0_35] : memref<1x8x128xf32, #tpu.memory_space<vmem>>, vector<1x8x128xf32>
      %c1_i32_36 = arith.constant 1 : i32
      %69 = vector.broadcast %c1_i32_36 : i32 to vector<1x8x128xi32>
      %70 = arith.cmpi eq, %3, %69 : vector<1x8x128xi32>
      %cst_37 = arith.constant 0.000000e+00 : f32
      %71 = vector.broadcast %54 : f32 to vector<1x8x128xf32>
      %72 = vector.broadcast %cst_37 : f32 to vector<1x8x128xf32>
      %73 = arith.select %70, %71, %72 : vector<1x8x128xi1>, vector<1x8x128xf32>
      %c2_i32 = arith.constant 2 : i32
      %74 = vector.broadcast %c2_i32 : i32 to vector<1x8x128xi32>
      %75 = arith.cmpi eq, %3, %74 : vector<1x8x128xi32>
      %cst_38 = arith.constant 0.000000e+00 : f32
      %76 = vector.broadcast %67 : f32 to vector<1x8x128xf32>
      %77 = vector.broadcast %cst_38 : f32 to vector<1x8x128xf32>
      %78 = arith.select %75, %76, %77 : vector<1x8x128xi1>, vector<1x8x128xf32>
      %79 = arith.addf %73, %78 : vector<1x8x128xf32>
      %80 = arith.addf %68, %79 : vector<1x8x128xf32>
      %c0_39 = arith.constant 0 : index
      %c0_40 = arith.constant 0 : index
      %c0_41 = arith.constant 0 : index
      %81 = vector.load %arg9[%c0_39, %c0_40, %c0_41] : memref<1x8x128xf32, #tpu.memory_space<vmem>>, vector<1x8x128xf32>
      tpu.vector_store %arg9[%c0_39, %c0_40, %c0_41], %80 {strides = array<i32>} : memref<1x8x128xf32, #tpu.memory_space<vmem>>, vector<1x8x128xf32>,
    } else {
    }
    return
  }
  func.func @transform_0(%arg0: i32, %arg1: i32) -> (i32, i32) {
    %c1_i32 = arith.constant 1 : i32
    %0 = arith.muli %arg0, %c1_i32 : i32
    %1 = arith.addi %0, %arg1 : i32
    %c0_i32 = arith.constant 0 : i32
    %2 = arith.minsi %1, %c0_i32 : i32
    %c0_i32_0 = arith.constant 0 : i32
    %c0_i32_1 = arith.constant 0 : i32
    return %2, %c0_i32_0 : i32, i32
  }
  func.func @transform_1(%arg0: i32, %arg1: i32) -> (i32, i32) {
    %c1_i32 = arith.constant 1 : i32
    %0 = arith.muli %arg0, %c1_i32 : i32
    %1 = arith.addi %0, %arg1 : i32
    %c0_i32 = arith.constant 0 : i32
    %2 = arith.minsi %1, %c0_i32 : i32
    %c0_i32_0 = arith.constant 0 : i32
    %c0_i32_1 = arith.constant 0 : i32
    return %2, %c0_i32_0 : i32, i32
  }
  func.func @transform_2(%arg0: i32, %arg1: i32) -> (i32, i32) {
    %c1_i32 = arith.constant 1 : i32
    %0 = arith.muli %arg0, %c1_i32 : i32
    %1 = arith.addi %0, %arg1 : i32
    %c0_i32 = arith.constant 0 : i32
    %2 = arith.minsi %1, %c0_i32 : i32
    %c0_i32_0 = arith.constant 0 : i32
    %c0_i32_1 = arith.constant 0 : i32
    return %2, %c0_i32_0 : i32, i32
  }
  func.func @transform_3(%arg0: i32, %arg1: i32) -> (i32, i32) {
    %c0_i32 = arith.constant 0 : i32
    %c0_i32_0 = arith.constant 0 : i32
    %c0_i32_1 = arith.constant 0 : i32
    return %c0_i32, %c0_i32_0 : i32, i32
  }
  func.func @transform_4(%arg0: i32, %arg1: i32) -> (i32, i32) {
    %c0_i32 = arith.constant 0 : i32
    %c0_i32_0 = arith.constant 0 : i32
    %c0_i32_1 = arith.constant 0 : i32
    return %c0_i32, %c0_i32_0 : i32, i32
  }
  func.func @transform_5(%arg0: i32, %arg1: i32) -> (i32, i32) {
    %c0_i32 = arith.constant 0 : i32
    %c0_i32_0 = arith.constant 0 : i32
    %c0_i32_1 = arith.constant 0 : i32
    return %c0_i32, %c0_i32_0 : i32, i32
  }
  func.func @transform_6(%arg0: i32, %arg1: i32) -> (i32, i32) {
    %c0_i32 = arith.constant 0 : i32
    %c0_i32_0 = arith.constant 0 : i32
    %c0_i32_1 = arith.constant 0 : i32
    return %c0_i32, %c0_i32_0 : i32, i32
  }
  func.func @transform_7(%arg0: i32, %arg1: i32) -> (i32, i32, i32) {
    %c0_i32 = arith.constant 0 : i32
    %c0_i32_0 = arith.constant 0 : i32
    %c0_i32_1 = arith.constant 0 : i32
    return %arg0, %c0_i32, %c0_i32_0 : i32, i32, i32
  }
}

</mosaic_0001>

<llo_original>
// kernel: tpu_custom_call.1
$region0: #{tpu_custom_call.1}
  #allocation0 [shape = 'u32[]', space=smem, size = 0x4, offset = 0x4, fixed_abs, tag = 'smem constant byte address 0x4 - core index']
  #allocation1 [shape = 'u32[144,128]{1,0:T(1,128)}', space=vmem, size = 0x12000, scoped, tag = 'internal scratch']
  %s0 = inlined_call_operand.hbm [shape: f32[20,24], index: 0, kind: input, shape index: {}]
  %s1 = inlined_call_operand.hbm [shape: f32[20,24], index: 1, kind: input, shape index: {}]
  %s2 = inlined_call_operand.hbm [shape: f32[20,24], index: 2, kind: input, shape index: {}]
  %s3 = inlined_call_operand.hbm [shape: f32[2,24], index: 3, kind: input, shape index: {}]
  %s4 = inlined_call_operand.hbm [shape: f32[2,24], index: 4, kind: input, shape index: {}]
  %s5 = inlined_call_operand.hbm [shape: f32[2,16], index: 5, kind: input, shape index: {}]
  %s6 = inlined_call_operand.hbm [shape: f32[2,16], index: 6, kind: input, shape index: {}]
  %s7 = inlined_call_operand.hbm [shape: f32[1,8,128], index: 7, kind: output, shape index: {}]
  %s8 = sld [smem:[#allocation0]]
  $region74: #{tpu_custom_call.1} parent=0
    _
  %s10 = ssub.s32 1, %s8
  %s11 = scalar_select 0, %s10, %s8
  $region1: #{tpu_custom_call.1} parent=0
    #allocation2 [shape = 'u8[12288]{0}', space=vmem, size = 0x3000, scoped, tag = 'input window, operand 0, single buffered']
    #allocation3 [shape = 's32[1]{0}', space=sflag, size = 0x4, scoped, tag = 'scoped memory for tpu_custom_call.1']
    #allocation4 [shape = 's32[1]{0}', space=sflag, size = 0x4, scoped, tag = 'scoped memory for tpu_custom_call.1']
    #allocation5 [shape = 'u8[12288]{0}', space=vmem, size = 0x3000, scoped, tag = 'input window, operand 1, single buffered']
    #allocation6 [shape = 's32[1]{0}', space=sflag, size = 0x4, scoped, tag = 'scoped memory for tpu_custom_call.1']
    #allocation7 [shape = 'u8[12288]{0}', space=vmem, size = 0x3000, scoped, tag = 'input window, operand 2, single buffered']
    #allocation8 [shape = 'u8[1024]{0}', space=vmem, size = 0x400, scoped, tag = 'input window, operand 3, single buffered']
    #allocation9 [shape = 's32[1]{0}', space=sflag, size = 0x4, scoped, tag = 'scoped memory for tpu_custom_call.1']
    #allocation10 [shape = 'u8[1024]{0}', space=vmem, size = 0x400, scoped, tag = 'input window, operand 4, single buffered']
    #allocation11 [shape = 'u8[1024]{0}', space=vmem, size = 0x400, scoped, tag = 'input window, operand 5, single buffered']
    #allocation12 [shape = 's32[1]{0}', space=sflag, size = 0x4, scoped, tag = 'scoped memory for tpu_custom_call.1']
    #allocation13 [shape = 'u8[1024]{0}', space=vmem, size = 0x400, scoped, tag = 'input window, operand 6, single buffered']
    #allocation14 [shape = 'u8[4096]{0}', space=vmem, size = 0x1000, scoped, tag = 'output window, operand 0, single buffered']
    %12 = vsyncpa [#allocation3], 0
    %13 = vsyncpa [#allocation6], 0
    %14 = vsyncpa [#allocation9], 0
    %15 = vsyncpa [#allocation12], 0
    %16 = vsyncpa [#allocation4], 0
    // Predicated region
    $region2: #{tpu_custom_call.1} parent=1 // pred_check
      _
    $region3: #{tpu_custom_call.1} parent=1 // pred_check_branch
      %18 = sbr.rel (0) target = $region5
    $region4: #{tpu_custom_call.1} parent=1 // pred_region
      %s19 = sadd.s32 0, 0
      %p20 = scmp.lt.s32.totalorder %s19, 0
      %s21 = scalar_select %p20, %s19, 0
      %s22 = smul.u32 3, %s21
      %s24 = ssub.s32 384, 384
      %25 = vsyncadd [#allocation3], %s24
      %s26 = smul.addr %s22, 128
      %s27 = scalar_lea.hbm %s0, %s26
      %s28 = sshll.u32 [#allocation2], 4
      %s29 = int_to_ptr.vmem [resolvable:$true] %s28
      %34 = dma.hbm_to_vmem [thread:$0]  %s27, 384, %s29, [#allocation3], 128, 128, 8
    $region5: #{tpu_custom_call.1} parent=1 // pred_fallthru
      _
    // Predicated region
    $region6: #{tpu_custom_call.1} parent=1 // pred_check
      _
    $region7: #{tpu_custom_call.1} parent=1 // pred_check_branch
      %36 = sbr.rel (0) target = $region9
    $region8: #{tpu_custom_call.1} parent=1 // pred_region
      %s37 = sadd.s32 0, 0
      %p38 = scmp.lt.s32.totalorder %s37, 0
      %s39 = scalar_select %p38, %s37, 0
      %s40 = smul.u32 3, %s39
      %s42 = ssub.s32 384, 384
      %43 = vsyncadd [#allocation6], %s42
      %s44 = smul.addr %s40, 128
      %s45 = scalar_lea.hbm %s1, %s44
      %s46 = sshll.u32 [#allocation5], 4
      %s47 = int_to_ptr.vmem [resolvable:$true] %s46
      %52 = dma.hbm_to_vmem [thread:$0]  %s45, 384, %s47, [#allocation6], 128, 128, 8
    $region9: #{tpu_custom_call.1} parent=1 // pred_fallthru
      _
    // Predicated region
    $region10: #{tpu_custom_call.1} parent=1 // pred_check
      _
    $region11: #{tpu_custom_call.1} parent=1 // pred_check_branch
      %54 = sbr.rel (0) target = $region13
    $region12: #{tpu_custom_call.1} parent=1 // pred_region
      %s55 = sadd.s32 0, 0
      %p56 = scmp.lt.s32.totalorder %s55, 0
      %s57 = scalar_select %p56, %s55, 0
      %s58 = smul.u32 3, %s57
      %s60 = ssub.s32 384, 384
      %61 = vsyncadd [#allocation6], %s60
      %s62 = smul.addr %s58, 128
      %s63 = scalar_lea.hbm %s2, %s62
      %s64 = sshll.u32 [#allocation7], 4
      %s65 = int_to_ptr.vmem [resolvable:$true] %s64
      %70 = dma.hbm_to_vmem [thread:$0]  %s63, 384, %s65, [#allocation6], 128, 128, 8
    $region13: #{tpu_custom_call.1} parent=1 // pred_fallthru
      _
    // Predicated region
    $region14: #{tpu_custom_call.1} parent=1 // pred_check
      _
    $region15: #{tpu_custom_call.1} parent=1 // pred_check_branch
      %72 = sbr.rel (0) target = $region17
    $region16: #{tpu_custom_call.1} parent=1 // pred_region
      %s74 = ssub.s32 32, 32
      %75 = vsyncadd [#allocation9], %s74
      %s77 = sshll.u32 [#allocation8], 4
      %s78 = int_to_ptr.vmem [resolvable:$true] %s77
      %80 = dma.hbm_to_vmem [thread:$0]  %s3, 32, %s78, [#allocation9]
    $region17: #{tpu_custom_call.1} parent=1 // pred_fallthru
      _
    // Predicated region
    $region18: #{tpu_custom_call.1} parent=1 // pred_check
      _
    $region19: #{tpu_custom_call.1} parent=1 // pred_check_branch
      %82 = sbr.rel (0) target = $region21
    $region20: #{tpu_custom_call.1} parent=1 // pred_region
      %s84 = ssub.s32 32, 32
      %85 = vsyncadd [#allocation9], %s84
      %s87 = sshll.u32 [#allocation10], 4
      %s88 = int_to_ptr.vmem [resolvable:$true] %s87
      %90 = dma.hbm_to_vmem [thread:$0]  %s4, 32, %s88, [#allocation9]
    $region21: #{tpu_custom_call.1} parent=1 // pred_fallthru
      _
    // Predicated region
    $region22: #{tpu_custom_call.1} parent=1 // pred_check
      _
    $region23: #{tpu_custom_call.1} parent=1 // pred_check_branch
      %92 = sbr.rel (0) target = $region25
    $region24: #{tpu_custom_call.1} parent=1 // pred_region
      %s94 = ssub.s32 32, 32
      %95 = vsyncadd [#allocation12], %s94
      %s97 = sshll.u32 [#allocation11], 4
      %s98 = int_to_ptr.vmem [resolvable:$true] %s97
      %100 = dma.hbm_to_vmem [thread:$0]  %s5, 32, %s98, [#allocation12]
    $region25: #{tpu_custom_call.1} parent=1 // pred_fallthru
      _
    // Predicated region
    $region26: #{tpu_custom_call.1} parent=1 // pred_check
      _
    $region27: #{tpu_custom_call.1} parent=1 // pred_check_branch
      %102 = sbr.rel (0) target = $region29
    $region28: #{tpu_custom_call.1} parent=1 // pred_region
      %s104 = ssub.s32 32, 32
      %105 = vsyncadd [#allocation12], %s104
      %s107 = sshll.u32 [#allocation13], 4
      %s108 = int_to_ptr.vmem [resolvable:$true] %s107
      %110 = dma.hbm_to_vmem [thread:$0]  %s6, 32, %s108, [#allocation12]
    $region29: #{tpu_custom_call.1} parent=1 // pred_fallthru
      _
    // Predicated region
    $region30: #{tpu_custom_call.1} parent=1 // pred_check
      _
    $region31: #{tpu_custom_call.1} parent=1 // pred_check_branch
      %112 = sbr.rel (0) target = $region33
    $region32: #{tpu_custom_call.1} parent=1 // pred_region
      %113 = dma.done [#allocation3], 384
    $region33: #{tpu_custom_call.1} parent=1 // pred_fallthru
      _
    // Predicated region
    $region34: #{tpu_custom_call.1} parent=1 // pred_check
      _
    $region35: #{tpu_custom_call.1} parent=1 // pred_check_branch
      %115 = sbr.rel (0) target = $region37
    $region36: #{tpu_custom_call.1} parent=1 // pred_region
      %116 = dma.done [#allocation6], 384
    $region37: #{tpu_custom_call.1} parent=1 // pred_fallthru
      _
    // Predicated region
    $region38: #{tpu_custom_call.1} parent=1 // pred_check
      _
    $region39: #{tpu_custom_call.1} parent=1 // pred_check_branch
      %118 = sbr.rel (0) target = $region41
    $region40: #{tpu_custom_call.1} parent=1 // pred_region
      %119 = dma.done [#allocation6], 384
    $region41: #{tpu_custom_call.1} parent=1 // pred_fallthru
      _
    // Predicated region
    $region42: #{tpu_custom_call.1} parent=1 // pred_check
      _
    $region43: #{tpu_custom_call.1} parent=1 // pred_check_branch
      %121 = sbr.rel (0) target = $region45
    $region44: #{tpu_custom_call.1} parent=1 // pred_region
      %122 = dma.done [#allocation9], 32
    $region45: #{tpu_custom_call.1} parent=1 // pred_fallthru
      _
    // Predicated region
    $region46: #{tpu_custom_call.1} parent=1 // pred_check
      _
    $region47: #{tpu_custom_call.1} parent=1 // pred_check_branch
      %124 = sbr.rel (0) target = $region49
    $region48: #{tpu_custom_call.1} parent=1 // pred_region
      %125 = dma.done [#allocation9], 32
    $region49: #{tpu_custom_call.1} parent=1 // pred_fallthru
      _
    // Predicated region
    $region50: #{tpu_custom_call.1} parent=1 // pred_check
      _
    $region51: #{tpu_custom_call.1} parent=1 // pred_check_branch
      %127 = sbr.rel (0) target = $region53
    $region52: #{tpu_custom_call.1} parent=1 // pred_region
      %128 = dma.done [#allocation12], 32
    $region53: #{tpu_custom_call.1} parent=1 // pred_fallthru
      _
    // Predicated region
    $region54: #{tpu_custom_call.1} parent=1 // pred_check
      _
    $region55: #{tpu_custom_call.1} parent=1 // pred_check_branch
      %130 = sbr.rel (0) target = $region57
    $region56: #{tpu_custom_call.1} parent=1 // pred_region
      %131 = dma.done [#allocation12], 32
    $region57: #{tpu_custom_call.1} parent=1 // pred_fallthru
      _
    %s132 = sadd.s32 0, 0
    %p133 = scmp.lt.s32.totalorder %s132, 0
    %s134 = scalar_select %p133, %s132, 0
    %s135 = smul.u32 3, %s134
    %s136 = sadd.s32 0, 0
    %p137 = scmp.lt.s32.totalorder %s136, 0
    %s138 = scalar_select %p137, %s136, 0
    %s139 = smul.u32 3, %s138
    %s140 = sadd.s32 0, 0
    %p141 = scmp.lt.s32.totalorder %s140, 0
    %s142 = scalar_select %p141, %s140, 0
    %s143 = smul.u32 3, %s142
    %p144 = scmp.eq.s32.totalorder 0, 0
    // Predicated region
    $region58: #{tpu_custom_call.1} parent=1 // pred_check
      %p145 = pneg %p144
    $region59: #{tpu_custom_call.1} parent=1 // pred_check_branch
      %147 = sbr.rel (%p145) target = $region61
    $region60: #{tpu_custom_call.1} parent=1 // pred_region
      %148 = vst [vmem:[#allocation14] sm:$0xff] 0.0
    $region61: #{tpu_custom_call.1} parent=1 // pred_fallthru
      _
    %v149 = vlaneseq
    %v150 = vand.u32 %v149, 127
    %s151 = sadd.s32 0, 0
    %s152 = smul.u32 %s151, 20
    %v153 = vld [vmem:[#allocation7] sm:$0xff]
    %v154 = vld [vmem:[#allocation7 + $0x8] sm:$0xff]
    %v155 = vld [vmem:[#allocation7 + $0x10] sm:$0xf]
    %v156 = vld [vmem:[#allocation2] sm:$0xff]
    %v157 = vld [vmem:[#allocation2 + $0x8] sm:$0xff]
    %v158 = vld [vmem:[#allocation2 + $0x10] sm:$0xf]
    %v159 = vsub.f32 %v156, %v153
    %v160 = vsub.f32 %v157, %v154
    %v161 = vsub.f32 %v158, %v155
    %v162 = vld [vmem:[#allocation5] sm:$0xff]
    %v163 = vld [vmem:[#allocation5 + $0x8] sm:$0xff]
    %v164 = vld [vmem:[#allocation5 + $0x10] sm:$0xf]
    %v165 = vsub.f32 %v162, %v153
    %v166 = vsub.f32 %v163, %v154
    %v167 = vsub.f32 %v164, %v155
    %v168 = vmul.f32 %v159, %v159
    %v169 = vmul.f32 %v160, %v160
    %v170 = vmul.f32 %v161, %v161
    %v171 = vmul.f32 %v165, %v165
    %v172 = vmul.f32 %v166, %v166
    %v173 = vmul.f32 %v167, %v167
    %v174 = vadd.f32 %v168, %v171
    %v175 = vadd.f32 %v169, %v172
    %v176 = vadd.f32 %v170, %v173
    %v177 = vlaneseq
    %v178 = vshrl.u32 %v177, 7
    %v179 = vadd.s32 %v178, 8
    %v180 = vadd.s32 %v178, 16
    %v181 = vstv %s152
    %v182 = vadd.s32 %v181, %v178
    %v183 = vadd.s32 %v181, %v179
    %v184 = vadd.s32 %v181, %v180
    %vm185 = vcmp.lt.s32.totalorder %v182, 20
    %vm186 = vcmp.lt.s32.totalorder %v183, 20
    %vm187 = vcmp.lt.s32.totalorder %v184, 20
    %v188 = vsel %vm185, %v174, 0.0
    %v189 = vsel %vm186, %v175, 0.0
    %v190 = vsel %vm187, %v176, 0.0
    %vm191 = vcmask 195584
    %v192 = vsel %vm191, %v188, 0.0
    %v193 = vsel %vm191, %v189, 0.0
    %v194 = vadd.f32 %v192, %v193
    %vm195 = vcmask 191488
    %v196 = vsel %vm195, %v190, 0.0
    %v197 = vadd.f32 %v194, %v196
    %198 = vadd.xlane.f32.xlu0 %v197
    %v199 = vpop.xlane.xlu0 %198
    %v200 = vrot.slane %v199, 4
    %v201 = vadd.f32 %v199, %v200
    %v202 = vrot.slane %v201, 2
    %v203 = vadd.f32 %v201, %v202
    %v204 = vrot.slane %v203, 1
    %v205 = vadd.f32 %v203, %v204
    %s206 = vtos %v205
    %v207 = vld [vmem:[#allocation14] sm:$0xff]
    %vm208 = vcmp.eq.s32.totalorder %v150, 0
    %v209 = vstv %s206
    %v210 = vsel %vm208, %v209, 0.0
    %v211 = vadd.f32 %v207, %v210
    %212 = vst [vmem:[#allocation14] sm:$0xff] %v211
    %p213 = scmp.eq.s32.totalorder 0, 0
    %p214 = pnand %p213, %p144
    %p215 = pneg %p214
    // Predicated region
    $region62: #{tpu_custom_call.1} parent=1 // pred_check
      _
    $region63: #{tpu_custom_call.1} parent=1 // pred_check_branch
      %217 = sbr.rel (%p214) target = $region65
    $region64: #{tpu_custom_call.1} parent=1 // pred_region
      %v218 = vld [vmem:[#allocation8] sm:$0x3]
      %v219 = vld [vmem:[#allocation10] sm:$0x3]
      %v220 = vmax.f32 %v218, 0.0
      %v221 = vmul.f32 %v218, %v219
      %v222 = vsub.f32 %v220, %v221
      %v223 = vand.u32 2147483647, %v218
      %v224 = vsub.f32 0.0, %v223
      %v225 = vmul.f32 %v224, 1.442695
      %v226 = vpow.pop %v225
      %v227 = vadd.f32 %v226, 1.0
      %v228 = vlog2.pop %v227
      %v229 = vmul.f32 %v228, 0.6931472
      %v230 = vmul.f32 -0.5, %v226
      %v231 = vadd.f32 %v230, 1.0
      %v232 = vmul.f32 %v231, %v226
      %v233 = vand.u32 2147483647, %v226
      %vm234 = vcmp.lt.f32.partialorder %v233, 0.0004427343
      %v235 = vsel %vm234, %v232, %v229
      %v236 = vadd.f32 %v222, %v235
      %vm237 = vcmask 189440
      %v238 = vsel %vm237, %v236, 0.0
      %239 = vadd.xlane.f32.xlu0 %v238
      %v240 = vpop.xlane.xlu0 %239
      %v241 = vrot.slane %v240, 4
      %v242 = vadd.f32 %v240, %v241
      %v243 = vrot.slane %v242, 2
      %v244 = vadd.f32 %v242, %v243
      %v245 = vrot.slane %v244, 1
      %v246 = vadd.f32 %v244, %v245
      %s247 = vtos %v246
      %v248 = vld [vmem:[#allocation11] sm:$0x3]
      %v249 = vld [vmem:[#allocation13] sm:$0x3]
      %v250 = vadd.f32 %v249, 1.0
      %v251 = vmul.f32 %v248, %v248
      %v252 = vsub.f32 %v250, %v251
      %v253 = vmul.f32 %v249, 1.442695
      %v254 = vpow.pop %v253
      %v255 = vsub.f32 %v252, %v254
      %vm256 = vcmask 123904
      %v257 = vsel %vm256, %v255, 0.0
      %258 = vadd.xlane.f32.xlu0 %v257
      %v259 = vpop.xlane.xlu0 %258
      %v260 = vrot.slane %v259, 4
      %v261 = vadd.f32 %v259, %v260
      %v262 = vrot.slane %v261, 2
      %v263 = vadd.f32 %v261, %v262
      %v264 = vrot.slane %v263, 1
      %v265 = vadd.f32 %v263, %v264
      %s266 = vtos %v265
      %s267 = smul.f32 %s266, -0.5
      %v268 = vld [vmem:[#allocation14] sm:$0xff]
      %vm269 = vcmp.eq.s32.totalorder %v150, 1
      %v270 = vstv %s247
      %v271 = vsel %vm269, %v270, 0.0
      %vm272 = vcmp.eq.s32.totalorder %v150, 2
      %v273 = vstv %s267
      %v274 = vsel %vm272, %v273, 0.0
      %v275 = vadd.f32 %v271, %v274
      %v276 = vadd.f32 %v268, %v275
      %277 = vst [vmem:[#allocation14] sm:$0xff] %v276
    $region65: #{tpu_custom_call.1} parent=1 // pred_fallthru
      _
    // Predicated region
    $region66: #{tpu_custom_call.1} parent=1 // pred_check
      _
    $region67: #{tpu_custom_call.1} parent=1 // pred_check_branch
      %279 = sbr.rel (0) target = $region69
    $region68: #{tpu_custom_call.1} parent=1 // pred_region
      %s281 = ssub.s32 128, 128
      %282 = vsyncadd [#allocation4], %s281
      %s284 = sshll.u32 [#allocation14], 4
      %s285 = int_to_ptr.vmem [resolvable:$true] %s284
      %287 = dma.vmem_to_hbm [thread:$0]  %s285, 128, %s7, [#allocation4]
    $region69: #{tpu_custom_call.1} parent=1 // pred_fallthru
      _
    // Predicated region
    $region70: #{tpu_custom_call.1} parent=1 // pred_check
      _
    $region71: #{tpu_custom_call.1} parent=1 // pred_check_branch
      %289 = sbr.rel (0) target = $region73
    $region72: #{tpu_custom_call.1} parent=1 // pred_region
      %290 = dma.done [#allocation4], 128
    $region73: #{tpu_custom_call.1} parent=1 // pred_fallthru
      _
    %291 = vsyncpa [#allocation3], 1
    %292 = vsyncpa [#allocation6], 1
    %293 = vsyncpa [#allocation9], 1
    %294 = vsyncpa [#allocation12], 1
    %295 = vsyncpa [#allocation4], 1

</llo_original>
